<compile_context>
chip_gen: v6e
topology: v6e:2x2x1
jax: 0.10.0
libtpu: 0.0.40
codegen_flags: <defaults>
</compile_context>

<pallas_src>
import jax
import jax.numpy as jnp
from jax.experimental import pallas as pl
from jax.experimental.pallas import tpu as pltpu


def _round_down(n, m):
    return n // m * m


def _make_locked_mask(key, keep_prob, B, H, dtype):
    """(B, 1, H) locked dropout mask, values in {0, 1/keep_prob}, in `dtype`."""
    keep = jax.random.bernoulli(key, keep_prob, (B, 1, H))
    return keep.astype(dtype) * jnp.asarray(1.0 / keep_prob, dtype=dtype)


def _locked_dropout_kernel(len_ref, x_ref, mask_ref, o_ref):
    # len_ref:  (B,) int32 SMEM (scalar prefetch) - valid lengths per batch
    # x_ref:    (tile_t, H) VMEM tile of batch b, time-tile t
    # mask_ref: (1, H) VMEM locked mask for batch b (resident across t)
    # o_ref:    (tile_t, H)
    b = pl.program_id(0)
    t = pl.program_id(1)
    tile_t, _ = x_ref.shape

    length = len_ref[b]
    start = t * tile_t
    end = start + tile_t
    keep = mask_ref[...]                      # (1, H), already scaled by 1/(1-p)

    @pl.when(end <= length)                   # fully-valid interior tile
    def _():
        o_ref[...] = x_ref[...] * keep

    @pl.when(start >= length)                 # fully-padded tile -> zeros
    def _():
        o_ref[...] = jnp.zeros(o_ref.shape, o_ref.dtype)

    @pl.when(jnp.logical_and(start < length, end > length))   # boundary tile
    def _():
        t_ids = start + jax.lax.broadcasted_iota(jnp.int32, (tile_t, 1), 0)
        valid = t_ids < length                # (tile_t, 1)
        y = x_ref[...] * keep
        # jnp.where (not multiply) so garbage rows of a partial trailing block
        # cannot propagate NaN/Inf; their stores are discarded anyway.
        o_ref[...] = jnp.where(valid, y, jnp.zeros_like(y))


def locked_dropout_padded(x, lengths, *, p=0.3, key=None, training=True,
                          max_tile_t=None):
    """LockedDropout on a padded sequence.

    x:       (B, T, H) padded tensor (zeros at t >= lengths[b])
    lengths: (B,) int valid lengths
    Returns the padded view of the repacked output (padded steps are zero).
    """
    if not training or p == 0.0:
        return x
    if key is None:
        key = jax.random.PRNGKey(0)

    B, T, H = x.shape
    keep_prob = 1.0 - float(p)

    # Locked per-(batch, hidden) mask, computed once, in the input dtype so the
    # per-tile multiply runs at native width (bf16 math on v6e/v7x).
    mask = _make_locked_mask(key, keep_prob, B, H, x.dtype)

    # Per-TensorCore VMEM budget: 64 MiB on v7x, 128 MiB on v5e/v6e.
    try:
        vmem_cap = int(pltpu.get_tpu_info().vmem_capacity_bytes)
    except Exception:  # pragma: no cover - not on a TPU device
        vmem_cap = 64 << 20
    elt = jnp.dtype(x.dtype).itemsize          # real element size (bf16 = 2)
    budget = vmem_cap // 2                     # 2x double-buffered in + out

    # Largest time tile that fits; no jnp.pad -- the partial trailing tile is
    # handled by the cdiv grid (masked stores) + the in-kernel length mask.
    tile_t = T
    if max_tile_t is not None:
        tile_t = min(T, max(8, _round_down(int(max_tile_t), 8)))
    if 4 * tile_t * H * elt > budget:
        tile_t = max(8, _round_down(budget // (4 * H * elt), 8))
    grid_t = pl.cdiv(T, tile_t)

    tile_bytes = tile_t * H * elt
    vmem_limit = int(min(vmem_cap * 3 // 4,
                         max(6 * tile_bytes + (2 << 20), 16 << 20)))

    lengths_i32 = jnp.asarray(lengths, dtype=jnp.int32)

    out = pl.pallas_call(
        _locked_dropout_kernel,
        out_shape=jax.ShapeDtypeStruct((B, T, H), x.dtype),
        grid_spec=pltpu.PrefetchScalarGridSpec(
            num_scalar_prefetch=1,
            grid=(B, grid_t),
            in_specs=[
                pl.BlockSpec((None, tile_t, H),
                             lambda b, t, lens: (b, t, 0)),
                # Block index constant along t -> mask fetched once per batch.
                pl.BlockSpec((None, 1, H),
                             lambda b, t, lens: (b, 0, 0)),
            ],
            out_specs=pl.BlockSpec((None, tile_t, H),
                                   lambda b, t, lens: (b, t, 0)),
        ),
        compiler_params=pltpu.CompilerParams(
            dimension_semantics=("parallel", "parallel"),
            vmem_limit_bytes=vmem_limit,
        ),
    )(lengths_i32, x, mask)
    return out


if __name__ == "__main__":
    key = jax.random.PRNGKey(0)
    k_x, k_mask = jax.random.split(key)

    B, T, H = 2, 16, 128      # batch, max sequence length, rnn hidden size
    p = 0.3

    x = jax.random.normal(k_x, (B, T, H), dtype=jnp.float32)
    lengths = jnp.array([16, 11], dtype=jnp.int32)
    valid_bt = jnp.arange(T)[None, :] < lengths[:, None]
    x = x * valid_bt[..., None].astype(x.dtype)   # as pad_packed_sequence gives

    out = jax.block_until_ready(
        locked_dropout_padded(x, lengths, p=p, key=k_mask, training=True))

    # Pure-JAX reference: same key -> same locked mask.
    mask = _make_locked_mask(k_mask, 1.0 - p, B, H, x.dtype)
    expected = jnp.where(valid_bt[..., None], x * mask, 0.0)
    assert jnp.allclose(out, expected, atol=1e-6, rtol=1e-6), "out != reference"

    # Realized mask properties (run kernel on ones).
    ones_in = jnp.ones_like(x) * valid_bt[..., None].astype(x.dtype)
    ones_out = jax.block_until_ready(
        locked_dropout_padded(ones_in, lengths, p=p, key=k_mask, training=True))
    scale = 1.0 / (1.0 - p)
    ok_vals = jnp.isclose(ones_out, 0.0) | jnp.isclose(ones_out, scale, atol=1e-6)
    assert bool(jnp.all(ok_vals)), "mask values other than 0 and 1/(1-p)"
    assert bool(jnp.all(jnp.where(valid_bt[..., None], True, ones_out == 0.0))), \
        "padded timesteps not zeroed"
    locked_ok = jnp.where(valid_bt[..., None],
                          ones_out == ones_out[:, 0:1, :], True)
    assert bool(jnp.all(locked_ok)), "mask not locked across time"
    keep_rate = float(jnp.mean((ones_out[:, 0, :] > 0).astype(jnp.float32)))
    assert 0.45 < keep_rate < 0.95, f"implausible keep rate {keep_rate}"

    # Multi-tile path with a partial trailing time block (cdiv grid).
    T2 = 20
    x2 = jax.random.normal(k_x, (B, T2, H), dtype=jnp.float32)
    lengths2 = jnp.array([20, 13], dtype=jnp.int32)
    valid2 = jnp.arange(T2)[None, :] < lengths2[:, None]
    x2 = x2 * valid2[..., None].astype(x2.dtype)
    out2 = jax.block_until_ready(
        locked_dropout_padded(x2, lengths2, p=p, key=k_mask, training=True,
                              max_tile_t=8))
    expected2 = jnp.where(valid2[..., None], x2 * mask, 0.0)
    assert jnp.allclose(out2, expected2, atol=1e-6, rtol=1e-6), \
        "multi-tile output != reference"

    # eval mode / p == 0 are identity.
    assert jnp.array_equal(
        locked_dropout_padded(x, lengths, p=p, key=k_mask, training=False), x)
    assert jnp.array_equal(
        locked_dropout_padded(x, lengths, p=0.0, key=k_mask, training=True), x)

    print("KERNEL_OK")
</pallas_src>

<mosaic_0001>
module attributes {stable_mosaic.version = 11 : i64} {
  func.func @_locked_dropout_kernel(%arg0: i32, %arg1: i32, %arg2: memref<2xi32, #tpu.memory_space<smem>>, %arg3: memref<1x16x128xf32, #tpu.memory_space<vmem>>, %arg4: memref<1x1x128xf32, #tpu.memory_space<vmem>>, %arg5: memref<1x16x128xf32, #tpu.memory_space<vmem>>) attributes {dimension_semantics = [#tpu.dimension_semantics<parallel>, #tpu.dimension_semantics<parallel>], iteration_bounds = array<i64: 2, 1>, scalar_prefetch = 1 : i64, scratch_operands = 0 : i64, tpu.core_type = #tpu.core_type<tc>, window_params = [{transform_indices = @transform_0, window_bounds = array<i64: 1, 16, 128>}, {transform_indices = @transform_1, window_bounds = array<i64: 1, 1, 128>}, {transform_indices = @transform_2, window_bounds = array<i64: 1, 16, 128>}]} {
    %0 = arith.index_cast %arg0 : i32 to index
    %1 = memref.load %arg2[%0] : memref<2xi32, #tpu.memory_space<smem>>
    %c16_i32 = arith.constant 16 : i32
    %2 = arith.muli %arg1, %c16_i32 : i32
    %c16_i32_0 = arith.constant 16 : i32
    %3 = arith.addi %2, %c16_i32_0 : i32
    %c0 = arith.constant 0 : index
    %c0_1 = arith.constant 0 : index
    %c0_2 = arith.constant 0 : index
    %4 = vector.load %arg4[%c0, %c0_1, %c0_2] : memref<1x1x128xf32, #tpu.memory_space<vmem>>, vector<1x1x128xf32>
    %5 = vector.shape_cast %4 : vector<1x1x128xf32> to vector<1x128xf32>
    %6 = arith.cmpi sle, %3, %1 : i32
    %7 = arith.extui %6 : i1 to i32
    %c0_i32 = arith.constant 0 : i32
    %8 = arith.cmpi ne, %7, %c0_i32 : i32
    scf.if %8 {
      %c0_5 = arith.constant 0 : index
      %c0_6 = arith.constant 0 : index
      %c0_7 = arith.constant 0 : index
      %17 = vector.load %arg3[%c0_5, %c0_6, %c0_7] : memref<1x16x128xf32, #tpu.memory_space<vmem>>, vector<1x16x128xf32>
      %18 = vector.shape_cast %17 : vector<1x16x128xf32> to vector<16x128xf32>
      %19 = vector.broadcast %5 : vector<1x128xf32> to vector<16x128xf32>
      %20 = arith.mulf %18, %19 : vector<16x128xf32>
      %c0_8 = arith.constant 0 : index
      %c0_9 = arith.constant 0 : index
      %c0_10 = arith.constant 0 : index
      %21 = vector.load %arg5[%c0_8, %c0_9, %c0_10] : memref<1x16x128xf32, #tpu.memory_space<vmem>>, vector<1x16x128xf32>
      %22 = vector.shape_cast %21 : vector<1x16x128xf32> to vector<16x128xf32>
      %23 = vector.shape_cast %20 : vector<16x128xf32> to vector<1x16x128xf32>
      tpu.vector_store %arg5[%c0_8, %c0_9, %c0_10], %23 {strides = array<i32>} : memref<1x16x128xf32, #tpu.memory_space<vmem>>, vector<1x16x128xf32>,
    } else {
    }
    %9 = arith.cmpi sge, %2, %1 : i32
    %10 = arith.extui %9 : i1 to i32
    %c0_i32_3 = arith.constant 0 : i32
    %11 = arith.cmpi ne, %10, %c0_i32_3 : i32
    scf.if %11 {
      %cst = arith.constant 0.000000e+00 : f32
      %17 = vector.broadcast %cst : f32 to vector<16x128xf32>
      %c0_5 = arith.constant 0 : index
      %c0_6 = arith.constant 0 : index
      %c0_7 = arith.constant 0 : index
      %18 = vector.load %arg5[%c0_5, %c0_6, %c0_7] : memref<1x16x128xf32, #tpu.memory_space<vmem>>, vector<1x16x128xf32>
      %19 = vector.shape_cast %18 : vector<1x16x128xf32> to vector<16x128xf32>
      %20 = vector.shape_cast %17 : vector<16x128xf32> to vector<1x16x128xf32>
      tpu.vector_store %arg5[%c0_5, %c0_6, %c0_7], %20 {strides = array<i32>} : memref<1x16x128xf32, #tpu.memory_space<vmem>>, vector<1x16x128xf32>,
    } else {
    }
    %12 = arith.cmpi slt, %2, %1 : i32
    %13 = arith.cmpi sgt, %3, %1 : i32
    %14 = arith.andi %12, %13 : i1
    %15 = arith.extui %14 : i1 to i32
    %c0_i32_4 = arith.constant 0 : i32
    %16 = arith.cmpi ne, %15, %c0_i32_4 : i32
    scf.if %16 {
      %17 = tpu.iota {dimensions = array<i32: 0>} : vector<16x1xi32>
      %18 = vector.broadcast %2 : i32 to vector<16x1xi32>
      %19 = arith.addi %18, %17 : vector<16x1xi32>
      %20 = vector.broadcast %1 : i32 to vector<16x1xi32>
      %21 = arith.cmpi slt, %19, %20 : vector<16x1xi32>
      %c0_5 = arith.constant 0 : index
      %c0_6 = arith.constant 0 : index
      %c0_7 = arith.constant 0 : index
      %22 = vector.load %arg3[%c0_5, %c0_6, %c0_7] : memref<1x16x128xf32, #tpu.memory_space<vmem>>, vector<1x16x128xf32>
      %23 = vector.shape_cast %22 : vector<1x16x128xf32> to vector<16x128xf32>
      %24 = vector.broadcast %5 : vector<1x128xf32> to vector<16x128xf32>
      %25 = arith.mulf %23, %24 : vector<16x128xf32>
      %cst = arith.constant 0.000000e+00 : f32
      %26 = vector.broadcast %cst : f32 to vector<16x128xf32>
      %27 = vector.shape_cast %21 : vector<16x1xi1> to vector<16x1xi1>
      %28 = vector.broadcast %27 : vector<16x1xi1> to vector<16x128xi1>
      %29 = arith.select %28, %25, %26 : vector<16x128xi1>, vector<16x128xf32>
      %c0_8 = arith.constant 0 : index
      %c0_9 = arith.constant 0 : index
      %c0_10 = arith.constant 0 : index
      %30 = vector.load %arg5[%c0_8, %c0_9, %c0_10] : memref<1x16x128xf32, #tpu.memory_space<vmem>>, vector<1x16x128xf32>
      %31 = vector.shape_cast %30 : vector<1x16x128xf32> to vector<16x128xf32>
      %32 = vector.shape_cast %29 : vector<16x128xf32> to vector<1x16x128xf32>
      tpu.vector_store %arg5[%c0_8, %c0_9, %c0_10], %32 {strides = array<i32>} : memref<1x16x128xf32, #tpu.memory_space<vmem>>, vector<1x16x128xf32>,
    } else {
    }
    return
  }
  func.func @transform_0(%arg0: i32, %arg1: i32, %arg2: memref<2xi32, #tpu.memory_space<smem>>) -> (i32, i32, i32) {
    %c0_i32 = arith.constant 0 : i32
    %c0_i32_0 = arith.constant 0 : i32
    return %arg0, %arg1, %c0_i32 : i32, i32, i32
  }
  func.func @transform_1(%arg0: i32, %arg1: i32, %arg2: memref<2xi32, #tpu.memory_space<smem>>) -> (i32, i32, i32) {
    %c0_i32 = arith.constant 0 : i32
    %c0_i32_0 = arith.constant 0 : i32
    %c0_i32_1 = arith.constant 0 : i32
    return %arg0, %c0_i32, %c0_i32_0 : i32, i32, i32
  }
  func.func @transform_2(%arg0: i32, %arg1: i32, %arg2: memref<2xi32, #tpu.memory_space<smem>>) -> (i32, i32, i32) {
    %c0_i32 = arith.constant 0 : i32
    %c0_i32_0 = arith.constant 0 : i32
    return %arg0, %arg1, %c0_i32 : i32, i32, i32
  }
}

</mosaic_0001>

<llo_original>
// kernel: tpu_custom_call.1
$region0: #{tpu_custom_call.1}
  #allocation0 [shape = 'u32[]', space=smem, size = 0x4, offset = 0x4, fixed_abs, tag = 'smem constant byte address 0x4 - core index']
  #allocation1 [shape = 'u32[144,128]{1,0:T(1,128)}', space=vmem, size = 0x12000, scoped, tag = 'internal scratch']
  #allocation2 [shape = 's32[1]{0}', space=sflag, size = 0x4, scoped, tag = 'scoped memory for tpu_custom_call.1']
  #allocation3 [shape = 'u8[512]{0}', space=smem, size = 0x200, scoped, tag = 'prefetched SMEM operand 0']
  %s0 = inlined_call_operand.hbm [shape: s32[2], index: 0, kind: input, shape index: {}]
  %s1 = inlined_call_operand.hbm [shape: f32[2,16,128], index: 1, kind: input, shape index: {}]
  %s2 = inlined_call_operand.vmem [shape: f32[2,1,128], index: 2, kind: input, shape index: {}]
  %s3 = inlined_call_operand.hbm [shape: f32[2,16,128], index: 3, kind: output, shape index: {}]
  %s4 = sld [smem:[#allocation0]]
  $region57: #{tpu_custom_call.1} parent=0
    _
  %s6 = ssub.s32 1, %s4
  %s7 = scalar_select 0, %s6, %s4
  %9 = dma.hbm_to_smem %s0, 16, [#allocation3], [#allocation2]
  %10 = dma.done [#allocation2], 16
  %11 = sfence
  $region1: #{tpu_custom_call.1} parent=0
    #allocation4 [shape = 'u8[16384]{0}', space=vmem, size = 0x4000, scoped, tag = 'input window, operand 1']
    #allocation5 [shape = 's32[2]{0}', space=sflag, size = 0x8, scoped, tag = 'scoped memory for tpu_custom_call.1']
    #allocation6 [shape = 's32[2]{0}', space=sflag, size = 0x8, scoped, tag = 'scoped memory for tpu_custom_call.1']
    #allocation7 [shape = 'u8[16384]{0}', space=vmem, size = 0x4000, scoped, tag = 'output window, operand 0']
    %12 = vsyncpa [#allocation5], 0
    %s13 = scalar_lea.sflag [#allocation5], 1
    %14 = vsyncpa %s13, 0
    %15 = vsyncpa [#allocation6], 0
    %s16 = scalar_lea.sflag [#allocation6], 1
    %17 = vsyncpa %s16, 0
    loop: start=0, step=1, limit=4
    $region2: #{tpu_custom_call.1} parent=1 // loop_pre_header
      _
    $region3: #{tpu_custom_call.1} parent=1 // loop_header
      %s19 = sphi 0, %s23
      %p20 = scmp.ge.s32.totalorder %s19, 4
      %s26 = sphi 0, %s38
      %s27 = sphi 0, %s34
      %s28 = sphi 0, %s26
      %s29 = sphi 0, %s27
      %s30 = sphi 0, %s28
      %s31 = sphi 0, %s29
      %s43 = sphi 0, %s45
      %s46 = sphi 0, %s43
      %s47 = sphi 0, %s46
      %s63 = sphi 0, %s47
      %s69 = sphi 0, %s71
      %s72 = sphi 0, %s69
      %s73 = sphi 0, %s72
      %s89 = sphi 0, %s73
      %s97 = sphi 0, %s99
      %s100 = sphi 0, %s97
      %s101 = sphi 0, %s100
      %s117 = sphi 0, %s101
    $region4: #{tpu_custom_call.1} parent=1 // loop_header_branch
      %22 = sbr.rel (%p20) target = $region8
    $region5: #{tpu_custom_call.1} parent=1 // loop_body
      %s24 = ssub.s32 %s19, 1
      %s25 = ssub.s32 %s19, 2
      %s32 = sadd.s32 1, %s27
      %p33 = scmp.ge.s32.totalorder %s32, 1
      %s34 = scalar_select %p33, 0, %s32
      %s35 = sadd.s32 1, %s26
      %s36 = scalar_select %p33, %s35, %s26
      %p37 = scmp.ge.s32.totalorder %s36, 2
      %s38 = scalar_select %p37, 0, %s36
      %s39 = ssub.s32 %s26, %s38
      %s40 = ssub.s32 %s27, %s34
      %s41 = sor.u32 %s39, %s40
      %p42 = scmp.eq.s32.totalorder %s41, 0
      %s44 = sadd.s32 %s43, 1
      %s45 = scalar_select %p42, %s43, %s44
      %p48 = pneg %p42
      %p49 = scmp.eq.s32.totalorder %s19, 1
      %p50 = por %p48, %p49
      %p51 = scmp.ne.s32.totalorder %s43, %s46
      %p52 = scmp.eq.s32.totalorder %s19, 0
      %p53 = por %p51, %p52
      %p54 = scmp.ne.s32.totalorder %s43, %s46
      %p55 = scmp.eq.s32.totalorder %s24, 1
      %p56 = por %p54, %p55
      %p57 = scmp.ne.s32.totalorder %s46, %s47
      %p58 = scmp.eq.s32.totalorder %s24, 0
      %p59 = por %p57, %p58
      %p60 = scmp.ne.s32.totalorder %s46, %s47
      %p61 = scmp.eq.s32.totalorder %s25, 1
      %p62 = por %p60, %p61
      %p64 = scmp.ne.s32.totalorder %s47, %s63
      %p65 = scmp.eq.s32.totalorder %s25, 0
      %p66 = por %p64, %p65
      %s67 = ssub.s32 %s26, %s38
      %p68 = scmp.eq.s32.totalorder %s67, 0
      %s70 = sadd.s32 %s69, 1
      %s71 = scalar_select %p68, %s69, %s70
      %p74 = pneg %p68
      %p75 = scmp.eq.s32.totalorder %s19, 1
      %p76 = por %p74, %p75
      %p77 = scmp.ne.s32.totalorder %s69, %s72
      %p78 = scmp.eq.s32.totalorder %s19, 0
      %p79 = por %p77, %p78
      %p80 = scmp.ne.s32.totalorder %s69, %s72
      %p81 = scmp.eq.s32.totalorder %s24, 1
      %p82 = por %p80, %p81
      %p83 = scmp.ne.s32.totalorder %s72, %s73
      %p84 = scmp.eq.s32.totalorder %s24, 0
      %p85 = por %p83, %p84
      %p86 = scmp.ne.s32.totalorder %s72, %s73
      %p87 = scmp.eq.s32.totalorder %s25, 1
      %p88 = por %p86, %p87
      %p90 = scmp.ne.s32.totalorder %s73, %s89
      %p91 = scmp.eq.s32.totalorder %s25, 0
      %p92 = por %p90, %p91
      %s93 = ssub.s32 %s26, %s38
      %s94 = ssub.s32 %s27, %s34
      %s95 = sor.u32 %s93, %s94
      %p96 = scmp.eq.s32.totalorder %s95, 0
      %s98 = sadd.s32 %s97, 1
      %s99 = scalar_select %p96, %s97, %s98
      %p102 = pneg %p96
      %p103 = scmp.eq.s32.totalorder %s19, 1
      %p104 = por %p102, %p103
      %p105 = scmp.ne.s32.totalorder %s97, %s100
      %p106 = scmp.eq.s32.totalorder %s19, 0
      %p107 = por %p105, %p106
      %p108 = scmp.ne.s32.totalorder %s97, %s100
      %p109 = scmp.eq.s32.totalorder %s24, 1
      %p110 = por %p108, %p109
      %p111 = scmp.ne.s32.totalorder %s100, %s101
      %p112 = scmp.eq.s32.totalorder %s24, 0
      %p113 = por %p111, %p112
      %p114 = scmp.ne.s32.totalorder %s100, %s101
      %p115 = scmp.eq.s32.totalorder %s25, 1
      %p116 = por %p114, %p115
      %p118 = scmp.ne.s32.totalorder %s101, %s117
      %p119 = scmp.eq.s32.totalorder %s25, 0
      %p120 = por %p118, %p119
      %p121 = scmp.le.s32.totalorder 1, %s19
      %p122 = scmp.lt.s32.totalorder %s19, 3
      %p123 = pnand %p121, %p122
      %p124 = pneg %p123
      // Predicated region
      $region9: #{tpu_custom_call.1} parent=5 // pred_check
        _
      $region10: #{tpu_custom_call.1} parent=5 // pred_check_branch
        %126 = sbr.rel (%p123) target = $region12
      $region11: #{tpu_custom_call.1} parent=5 // pred_region
        %s127 = ssub.s32 %s19, 1
      $region12: #{tpu_custom_call.1} parent=5 // pred_fallthru
        _
      %p128 = scmp.lt.s32.totalorder %s19, 2
      // Predicated region
      $region13: #{tpu_custom_call.1} parent=5 // pred_check
        %p129 = pneg %p128
      $region14: #{tpu_custom_call.1} parent=5 // pred_check_branch
        %131 = sbr.rel (%p129) target = $region16
      $region15: #{tpu_custom_call.1} parent=5 // pred_region
        // Predicated region
        $region17: #{tpu_custom_call.1} parent=15 // pred_check
          %p132 = pneg %p53
        $region18: #{tpu_custom_call.1} parent=15 // pred_check_branch
          %134 = sbr.rel (%p132) target = $region20
        $region19: #{tpu_custom_call.1} parent=15 // pred_region
          %s135 = sand.u32 %s43, 1
          %s136 = scalar_lea.sflag [#allocation5], %s135
          %s137 = sand.u32 %s43, 1
          %s138 = smul.addr %s137, 16
          %s139 = scalar_lea.vmem [#allocation4], %s138
          %s140 = smul.u32 2, %s27
          %s142 = ssub.s32 256, 256
          %143 = vsyncadd %s136, %s142
          %s144 = smul.addr %s26, 2
          %s145 = sadd.s32 %s140, %s144
          %s146 = smul.addr %s145, 128
          %s147 = scalar_lea.hbm %s1, %s146
          %s148 = sshll.u32 %s139, 4
          %s149 = int_to_ptr.vmem [resolvable:$true] %s148
          %154 = dma.hbm_to_vmem [thread:$0]  %s147, 256, %s149, %s136, 128, 128, 8
        $region20: #{tpu_custom_call.1} parent=15 // pred_fallthru
          _
        // Predicated region
        $region21: #{tpu_custom_call.1} parent=15 // pred_check
          %p155 = pneg %p79
        $region22: #{tpu_custom_call.1} parent=15 // pred_check_branch
          %157 = sbr.rel (%p155) target = $region24
        $region23: #{tpu_custom_call.1} parent=15 // pred_region
          %p158 = scmp.lt.s32.totalorder %s26, 1
          %s159 = scalar_select %p158, %s26, 1
          %s160 = scalar_lea.vmem %s2, %s159
        $region24: #{tpu_custom_call.1} parent=15 // pred_fallthru
          _
      $region16: #{tpu_custom_call.1} parent=5 // pred_fallthru
        _
      %p161 = scmp.le.s32.totalorder 1, %s19
      %p162 = scmp.lt.s32.totalorder %s19, 3
      %p163 = pnand %p161, %p162
      %p164 = pneg %p163
      // Predicated region
      $region25: #{tpu_custom_call.1} parent=5 // pred_check
        _
      $region26: #{tpu_custom_call.1} parent=5 // pred_check_branch
        %166 = sbr.rel (%p163) target = $region28
      $region27: #{tpu_custom_call.1} parent=5 // pred_region
        %s167 = ssub.s32 %s19, 1
        %s168 = sand.u32 %s46, 1
        %s169 = scalar_lea.sflag [#allocation5], %s168
        %s170 = sand.u32 %s46, 1
        %s171 = smul.addr %s170, 16
        %s172 = scalar_lea.vmem [#allocation4], %s171
        // Predicated region
        $region29: #{tpu_custom_call.1} parent=27 // pred_check
          %p173 = pneg %p59
        $region30: #{tpu_custom_call.1} parent=27 // pred_check_branch
          %175 = sbr.rel (%p173) target = $region32
        $region31: #{tpu_custom_call.1} parent=27 // pred_region
          %176 = dma.done %s169, 256
        $region32: #{tpu_custom_call.1} parent=27 // pred_fallthru
          _
        %s177 = sand.u32 %s46, 1
        %s178 = scalar_lea.sflag [#allocation5], %s177
        %s179 = sand.u32 %s46, 1
        %s180 = smul.addr %s179, 16
        %s181 = scalar_lea.vmem [#allocation4], %s180
        %p182 = pneg %p59
        %p183 = pneg %p56
        %p184 = scmp.lt.s32.totalorder %s28, 1
        %s185 = scalar_select %p184, %s28, 1
        %s186 = scalar_lea.vmem %s2, %s185
        %p187 = pneg %p85
        %p188 = pneg %p82
        %p189 = pneg %p113
        %p190 = pneg %p110
        %s191 = sand.u32 %s100, 1
        %s192 = scalar_lea.sflag [#allocation6], %s191
        %s193 = sand.u32 %s100, 1
        %s194 = smul.addr %s193, 16
        %s195 = scalar_lea.vmem [#allocation7], %s194
        %s196 = smul.u32 2, %s29
        %p197 = scmp.lt.s32.totalorder %s28, 1
        %s198 = scalar_select %p197, %s28, 1
        %s199 = scalar_lea.vmem %s2, %s198
        %s200 = smul.u32 2, %s29
        %s201 = sld [smem:[#allocation3 + %s28]]
        %s202 = smul.u32 %s29, 16
        %s203 = sadd.s32 %s202, 16
        %v204 = vld [vmem:[%s199] sm:$0x1]
        %p205 = scmp.le.s32.totalorder %s203, %s201
        // Predicated region
        $region33: #{tpu_custom_call.1} parent=27 // pred_check
          %p206 = pneg %p205
        $region34: #{tpu_custom_call.1} parent=27 // pred_check_branch
          %208 = sbr.rel (%p206) target = $region36
        $region35: #{tpu_custom_call.1} parent=27 // pred_region
          %v209 = vld [vmem:[%s172] sm:$0xff]
          %v210 = vld [vmem:[%s172 + $0x8] sm:$0xff]
          %v212 = vlaneseq
          %v213 = vshrl.u32 %v212, 7
          %v214 = vsub.s32 0, %v213
          %v215 = vrot.slane %v204, %v214
          %v217 = vmul.f32 %v209, %v215
          %v218 = vmul.f32 %v210, %v215
          %219 = vst [vmem:[%s195] sm:$0xff] %v217
          %220 = vst [vmem:[%s195 + $0x8] sm:$0xff] %v218
        $region36: #{tpu_custom_call.1} parent=27 // pred_fallthru
          _
        %p221 = scmp.ge.s32.totalorder %s202, %s201
        // Predicated region
        $region37: #{tpu_custom_call.1} parent=27 // pred_check
          %p222 = pneg %p221
        $region38: #{tpu_custom_call.1} parent=27 // pred_check_branch
          %224 = sbr.rel (%p222) target = $region40
        $region39: #{tpu_custom_call.1} parent=27 // pred_region
          %225 = vst [vmem:[%s195] sm:$0xff] 0.0
          %226 = vst [vmem:[%s195 + $0x8] sm:$0xff] 0.0
        $region40: #{tpu_custom_call.1} parent=27 // pred_fallthru
          _
        %p227 = scmp.lt.s32.totalorder %s202, %s201
        %p228 = scmp.gt.s32.totalorder %s203, %s201
        %p229 = pnand %p227, %p228
        %p230 = pneg %p229
        // Predicated region
        $region41: #{tpu_custom_call.1} parent=27 // pred_check
          _
        $region42: #{tpu_custom_call.1} parent=27 // pred_check_branch
          %232 = sbr.rel (%p229) target = $region44
        $region43: #{tpu_custom_call.1} parent=27 // pred_region
          %v233 = vlaneseq
          %v234 = vshrl.u32 %v233, 7
          %v235 = vadd.s32 %v234, 8
          %v236 = vstv %s202
          %v237 = vadd.s32 %v236, %v234
          %v238 = vadd.s32 %v236, %v235
          %v239 = vstv %s201
          %vm240 = vcmp.lt.s32.totalorder %v237, %v239
          %vm241 = vcmp.lt.s32.totalorder %v238, %v239
          %v242 = vld [vmem:[%s172] sm:$0xff]
          %v243 = vld [vmem:[%s172 + $0x8] sm:$0xff]
          %v245 = vlaneseq
          %v246 = vshrl.u32 %v245, 7
          %v247 = vsub.s32 0, %v246
          %v248 = vrot.slane %v204, %v247
          %v250 = vmul.f32 %v242, %v248
          %v251 = vmul.f32 %v243, %v248
          %v252 = vsel %vm240, 1, 0
          %v253 = vsel %vm241, 1, 0
          %vm254 = vcmp.eq.s32.totalorder %v252, 1
          %vm255 = vcmp.eq.s32.totalorder %v253, 1
          %v256 = vsel %vm254, %v250, 0.0
          %v257 = vsel %vm255, %v251, 0.0
          %258 = vst [vmem:[%s195] sm:$0xff] %v256
          %259 = vst [vmem:[%s195 + $0x8] sm:$0xff] %v257
        $region44: #{tpu_custom_call.1} parent=27 // pred_fallthru
          _
        %s260 = sand.u32 %s100, 1
        %s261 = scalar_lea.sflag [#allocation6], %s260
        %s262 = sand.u32 %s100, 1
        %s263 = smul.addr %s262, 16
        %s264 = scalar_lea.vmem [#allocation7], %s263
        // Predicated region
        $region45: #{tpu_custom_call.1} parent=27 // pred_check
          %p265 = pneg %p110
        $region46: #{tpu_custom_call.1} parent=27 // pred_check_branch
          %267 = sbr.rel (%p265) target = $region48
        $region47: #{tpu_custom_call.1} parent=27 // pred_region
          %s268 = smul.u32 2, %s29
          %s270 = ssub.s32 256, 256
          %271 = vsyncadd %s261, %s270
          %s272 = smul.addr %s28, 2
          %s273 = sadd.s32 %s268, %s272
          %s274 = smul.addr %s273, 128
          %s275 = scalar_lea.hbm %s3, %s274
          %s276 = sshll.u32 %s264, 4
          %s277 = int_to_ptr.vmem [resolvable:$true] %s276
          %282 = dma.vmem_to_hbm [thread:$0]  %s277, 256, %s275, %s261, 128, 128, 8
        $region48: #{tpu_custom_call.1} parent=27 // pred_fallthru
          _
      $region28: #{tpu_custom_call.1} parent=5 // pred_fallthru
        _
      %p283 = scmp.le.s32.totalorder 2, %s19
      // Predicated region
      $region49: #{tpu_custom_call.1} parent=5 // pred_check
        %p284 = pneg %p283
      $region50: #{tpu_custom_call.1} parent=5 // pred_check_branch
        %286 = sbr.rel (%p284) target = $region52
      $region51: #{tpu_custom_call.1} parent=5 // pred_region
        %s287 = ssub.s32 %s19, 2
        // Predicated region
        $region53: #{tpu_custom_call.1} parent=51 // pred_check
          %p288 = pneg %p116
        $region54: #{tpu_custom_call.1} parent=51 // pred_check_branch
          %290 = sbr.rel (%p288) target = $region56
        $region55: #{tpu_custom_call.1} parent=51 // pred_region
          %s291 = sand.u32 %s101, 1
          %s292 = scalar_lea.sflag [#allocation6], %s291
          %s293 = sand.u32 %s101, 1
          %s294 = smul.addr %s293, 16
          %s295 = scalar_lea.vmem [#allocation7], %s294
          %296 = dma.done %s292, 256
        $region56: #{tpu_custom_call.1} parent=51 // pred_fallthru
          _
      $region52: #{tpu_custom_call.1} parent=5 // pred_fallthru
        _
    $region6: #{tpu_custom_call.1} parent=1 // loop_footer
      %s23 = sadd.s32 1, %s19
    $region7: #{tpu_custom_call.1} parent=1 // loop_footer_branch
      %18 = sbr.rel target = $region3
    $region8: #{tpu_custom_call.1} parent=1 // loop_exit
      _
    %297 = vsyncpa [#allocation5], 1
    %s298 = scalar_lea.sflag [#allocation5], 1
    %299 = vsyncpa %s298, 1
    %300 = vsyncpa [#allocation6], 1
    %s301 = scalar_lea.sflag [#allocation6], 1
    %302 = vsyncpa %s301, 1

</llo_original>
